<compile_context>
chip_gen: v6e
topology: v6e:2x2x1
jax: 0.10.0
libtpu: 0.0.40
codegen_flags: <defaults>
</compile_context>

<pallas_src>
import functools

import jax
import jax.numpy as jnp
from jax.experimental import pallas as pl
from jax.experimental.pallas import tpu as pltpu


def _round_up(a: int, b: int) -> int:
    return ((a + b - 1) // b) * b


def _conv1d_tile_kernel(x_ref, h_ref, w_ref, b_ref, o_ref, *,
                        kernel_size: int, dilation: int, pad: int):
    # x_ref : (1, C_in, L_tile)      current length-tile of the input (compute dtype)
    # h_ref : (1, 1, C_in, halo_w)   halo columns: [:, :pad]=left, [:, pad:2*pad]=right
    # w_ref : (C_out, K*C_in)        fused per-tap weights, row block k <-> tap k
    # b_ref : (C_out, 1)             bias (float32)
    # o_ref : (1, C_out, L_tile)     output tile (float32)
    x_tile = x_ref[0]                       # (C_in, L_tile)
    l_tile = x_tile.shape[-1]

    # Extended tile [left halo | tile | right halo]: built ONCE (single copy);
    # every tap below is then a static lane-shifted slice of it.
    if pad > 0:
        halo = h_ref[0, 0]                  # (C_in, 2*pad)
        x_ext = jnp.concatenate(
            [halo[:, :pad], x_tile, halo[:, pad:2 * pad]], axis=1)   # (C_in, L_tile+2*pad)
    else:
        x_ext = x_tile

    # Stack the K shifted slabs along the sublane axis -> a single
    # (K*C_in)-deep MXU contraction (K is small and static, fully unrolled).
    if kernel_size == 1:
        xs = x_ext
    else:
        xs = jnp.concatenate(
            [x_ext[:, k * dilation:k * dilation + l_tile] for k in range(kernel_size)],
            axis=0)                         # (K*C_in, L_tile)

    acc = jnp.dot(w_ref[...], xs, preferred_element_type=jnp.float32)
    o_ref[0] = (acc + b_ref[...]).astype(o_ref.dtype)   # (C_out,1) broadcasts over lanes


def conv1d_weightnorm(x, v, g, bias, *, dilation: int = 1,
                      compute_dtype=jnp.bfloat16, l_tile_target: int = 1024):
    """Weight-normalized 1D conv with 'same' padding (PyTorch Conv1d semantics).

    x    : (N, C_in, L)
    v    : (C_out, C_in, K)   weight_v
    g    : (C_out,)           weight_g
    bias : (C_out,)
    Returns float32 (N, C_out, L).
    """
    N, C_in, L = x.shape
    C_out, C_in_w, K = v.shape
    assert C_in_w == C_in, "channel mismatch"
    # TODO(synk): the PyTorch padding formula only gives same-length output for odd K.
    assert K % 2 == 1, "only odd kernel_size reproduces 'same' output length"
    pad = dilation * (K - 1) // 2

    # ---- weight norm (glue, fp32): w = g * v / ||v||_(C_in,K) per out-channel
    v32 = v.astype(jnp.float32)
    v_norm = jnp.sqrt(jnp.sum(v32 ** 2, axis=(1, 2), keepdims=True))
    w = g.astype(jnp.float32).reshape(-1, 1, 1) * v32 / v_norm          # (C_out, C_in, K)
    # Fused layout: rows ordered [k*C_in + c]  <->  stacked shifted slabs in-kernel.
    w_fused = jnp.transpose(w, (0, 2, 1)).reshape(C_out, K * C_in)
    w_fused = w_fused.astype(compute_dtype)
    b2 = bias.astype(jnp.float32).reshape(C_out, 1)

    # ---- length tiling (lane-dense tiles; multiple of 128 when tiled)
    if L <= l_tile_target:
        L_tile = L
        assert pad <= L_tile, "receptive-field half-width exceeds signal length"
    else:
        L_tile = max(l_tile_target, _round_up(pad, 128))
    L_padded = _round_up(L, L_tile)
    T = L_padded // L_tile

    x_c = x.astype(compute_dtype)
    if L_padded != L:
        # TODO(synk): remainder copy only when L is not a multiple of the tile size.
        x_c = jnp.pad(x_c, ((0, 0), (0, 0), (0, L_padded - L)))

    # ---- halo columns per tile: tiny (N, T, C_in, 2*pad) side tensor, zeros at edges
    halo_w = max(2 * pad, 1)
    if pad > 0:
        xr = x_c.reshape(N, C_in, T, L_tile)
        zeros = jnp.zeros((N, C_in, 1, pad), compute_dtype)
        left = jnp.concatenate([zeros, xr[:, :, :-1, L_tile - pad:]], axis=2)
        right = jnp.concatenate([xr[:, :, 1:, :pad], zeros], axis=2)
        halos = jnp.concatenate([left, right], axis=3)      # (N, C_in, T, 2*pad)
        halos = jnp.transpose(halos, (0, 2, 1, 3))          # (N, T, C_in, 2*pad)
    else:
        halos = jnp.zeros((N, T, C_in, halo_w), compute_dtype)

    kernel = functools.partial(_conv1d_tile_kernel, kernel_size=K,
                               dilation=dilation, pad=pad)

    itemsize_in = jnp.dtype(compute_dtype).itemsize
    cost = pl.CostEstimate(
        flops=2 * N * C_out * C_in * K * L_padded,
        transcendentals=0,
        bytes_accessed=(N * C_in * L_padded * itemsize_in
                        + N * T * C_in * halo_w * itemsize_in
                        + C_out * K * C_in * itemsize_in
                        + C_out * 4
                        + N * C_out * L_padded * 4),
    )

    out = pl.pallas_call(
        kernel,
        out_shape=jax.ShapeDtypeStruct((N, C_out, L_padded), jnp.float32),
        grid_spec=pltpu.PrefetchScalarGridSpec(
            num_scalar_prefetch=0,
            grid=(N, T),
            in_specs=[
                pl.BlockSpec((1, C_in, L_tile), lambda n, t: (n, 0, t)),
                pl.BlockSpec((1, 1, C_in, halo_w), lambda n, t: (n, t, 0, 0)),
                pl.BlockSpec((C_out, K * C_in), lambda n, t: (0, 0)),
                pl.BlockSpec((C_out, 1), lambda n, t: (0, 0)),
            ],
            out_specs=pl.BlockSpec((1, C_out, L_tile), lambda n, t: (n, 0, t)),
        ),
        compiler_params=pltpu.CompilerParams(
            dimension_semantics=("parallel", "parallel"),
            vmem_limit_bytes=32 * 1024 * 1024),
        cost_estimate=cost,
    )(x_c, halos, w_fused, b2)

    if L_padded != L:
        out = out[:, :, :L]
    return out


def _reference_conv(x, v, g, bias, dilation=1, compute_dtype=jnp.float32):
    """Pure-JAX reference (lax conv) for sanity checking."""
    K = v.shape[-1]
    pad = dilation * (K - 1) // 2
    v32 = v.astype(jnp.float32)
    v_norm = jnp.sqrt(jnp.sum(v32 ** 2, axis=(1, 2), keepdims=True))
    w = g.astype(jnp.float32).reshape(-1, 1, 1) * v32 / v_norm
    out = jax.lax.conv_general_dilated(
        x.astype(compute_dtype), w.astype(compute_dtype),
        window_strides=(1,), padding=[(pad, pad)],
        rhs_dilation=(dilation,),
        dimension_numbers=("NCH", "OIH", "NCH"),
        preferred_element_type=jnp.float32)
    return out + bias.astype(jnp.float32).reshape(1, -1, 1)


if __name__ == "__main__":
    key = jax.random.PRNGKey(0)
    k1, k2, k3, k4 = jax.random.split(key, 4)

    # ---- case 1: module defaults (K=3, dilation=1), single-tile path
    N, C_in, C_out, L, K, dilation = 2, 4, 8, 16, 3, 1

    x = jax.random.normal(k1, (N, C_in, L), jnp.float32)
    # weight_v ~ kaiming-style normal, weight_g positive, bias small
    v = jax.random.normal(k2, (C_out, C_in, K), jnp.float32) * (2.0 / (C_in * K)) ** 0.5
    g = jnp.abs(jax.random.normal(k3, (C_out,), jnp.float32)) + 0.5
    bias = jax.random.normal(k4, (C_out,), jnp.float32) * 0.1

    out = conv1d_weightnorm(x, v, g, bias, dilation=dilation)
    out = jax.block_until_ready(out)
    assert out.shape == (N, C_out, L)

    # Reference with matching bf16 inputs / fp32 accumulation (tight check) ...
    ref_bf16 = _reference_conv(x, v, g, bias, dilation=dilation,
                               compute_dtype=jnp.bfloat16)
    assert jnp.allclose(out, ref_bf16, atol=1e-2, rtol=1e-2), "mismatch vs bf16 reference"
    # ... and a pure fp32 reference (loose check, bf16 inputs lose mantissa).
    ref_f32 = _reference_conv(x, v, g, bias, dilation=dilation,
                              compute_dtype=jnp.float32)
    assert jnp.allclose(out, ref_f32, atol=5e-2, rtol=5e-2), "mismatch vs fp32 reference"

    # ---- case 2: multi-tile + dilated path (exercises cross-tile halo exchange)
    L2, dilation2 = 512, 2
    x2 = jax.random.normal(k1, (N, C_in, L2), jnp.float32)
    out2 = jax.block_until_ready(
        conv1d_weightnorm(x2, v, g, bias, dilation=dilation2, l_tile_target=128))
    assert out2.shape == (N, C_out, L2)
    ref2_bf16 = _reference_conv(x2, v, g, bias, dilation=dilation2,
                                compute_dtype=jnp.bfloat16)
    assert jnp.allclose(out2, ref2_bf16, atol=1e-2, rtol=1e-2), "mismatch (tiled/dilated)"

    print("KERNEL_OK")
</pallas_src>

<mosaic_0001>
module attributes {stable_mosaic.version = 11 : i64} {
  func.func @_conv1d_tile_kernel(%arg0: i32, %arg1: i32, %arg2: memref<1x4x16xbf16, #tpu.memory_space<vmem>>, %arg3: memref<1x1x4x2xbf16, #tpu.memory_space<vmem>>, %arg4: memref<8x12xbf16, #tpu.memory_space<vmem>>, %arg5: memref<8x1xf32, #tpu.memory_space<vmem>>, %arg6: memref<1x8x16xf32, #tpu.memory_space<vmem>>) attributes {dimension_semantics = [#tpu.dimension_semantics<parallel>, #tpu.dimension_semantics<parallel>], iteration_bounds = array<i64: 2, 1>, scalar_prefetch = 0 : i64, scratch_operands = 0 : i64, tpu.core_type = #tpu.core_type<tc>, window_params = [{transform_indices = @transform_0, window_bounds = array<i64: 1, 4, 16>}, {transform_indices = @transform_1, window_bounds = array<i64: 1, 1, 4, 2>}, {pipeline_mode = #tpu.pipeline_mode<synchronous>, transform_indices = @transform_2, window_bounds = array<i64: 8, 12>}, {pipeline_mode = #tpu.pipeline_mode<synchronous>, transform_indices = @transform_3, window_bounds = array<i64: 8, 1>}, {transform_indices = @transform_4, window_bounds = array<i64: 1, 8, 16>}]} {
    %c0 = arith.constant 0 : index
    %c0_0 = arith.constant 0 : index
    %c0_1 = arith.constant 0 : index
    %0 = vector.load %arg2[%c0, %c0_0, %c0_1] : memref<1x4x16xbf16, #tpu.memory_space<vmem>>, vector<1x4x16xbf16>
    %1 = vector.shape_cast %0 : vector<1x4x16xbf16> to vector<4x16xbf16>
    %c0_2 = arith.constant 0 : index
    %c0_3 = arith.constant 0 : index
    %c0_4 = arith.constant 0 : index
    %c0_5 = arith.constant 0 : index
    %2 = vector.load %arg3[%c0_2, %c0_3, %c0_4, %c0_5] : memref<1x1x4x2xbf16, #tpu.memory_space<vmem>>, vector<1x1x4x2xbf16>
    %3 = vector.shape_cast %2 : vector<1x1x4x2xbf16> to vector<4x2xbf16>
    %4 = vector.extract_strided_slice %3 {offsets = [0, 0], sizes = [4, 1], strides = [1, 1]} : vector<4x2xbf16> to vector<4x1xbf16>
    %5 = vector.extract_strided_slice %3 {offsets = [0, 1], sizes = [4, 1], strides = [1, 1]} : vector<4x2xbf16> to vector<4x1xbf16>
    %6 = tpu.concatenate %4, %1, %5 in 1 : vector<4x1xbf16>, vector<4x16xbf16>, vector<4x1xbf16> -> vector<4x18xbf16>
    %7 = vector.extract_strided_slice %6 {offsets = [0, 0], sizes = [4, 16], strides = [1, 1]} : vector<4x18xbf16> to vector<4x16xbf16>
    %8 = vector.extract_strided_slice %6 {offsets = [0, 1], sizes = [4, 16], strides = [1, 1]} : vector<4x18xbf16> to vector<4x16xbf16>
    %9 = vector.extract_strided_slice %6 {offsets = [0, 2], sizes = [4, 16], strides = [1, 1]} : vector<4x18xbf16> to vector<4x16xbf16>
    %10 = tpu.concatenate %7, %8, %9 in 0 : vector<4x16xbf16>, vector<4x16xbf16>, vector<4x16xbf16> -> vector<12x16xbf16>
    %c0_6 = arith.constant 0 : index
    %c0_7 = arith.constant 0 : index
    %11 = vector.load %arg4[%c0_6, %c0_7] : memref<8x12xbf16, #tpu.memory_space<vmem>>, vector<8x12xbf16>
    %cst = arith.constant dense<0.000000e+00> : vector<8x16xf32>
    %12 = tpu.matmul %11, %10, %cst {dimension_numbers = #tpu.dot_dimension_numbers<[1], [0], [0], [1], [0, 0, 1, 1], [], []>} : vector<8x12xbf16>, vector<12x16xbf16>, vector<8x16xf32> -> vector<8x16xf32>
    %c0_8 = arith.constant 0 : index
    %c0_9 = arith.constant 0 : index
    %13 = vector.load %arg5[%c0_8, %c0_9] : memref<8x1xf32, #tpu.memory_space<vmem>>, vector<8x1xf32>
    %14 = vector.broadcast %13 : vector<8x1xf32> to vector<8x16xf32>
    %15 = arith.addf %12, %14 : vector<8x16xf32>
    %c0_10 = arith.constant 0 : index
    %c0_11 = arith.constant 0 : index
    %c0_12 = arith.constant 0 : index
    %16 = vector.load %arg6[%c0_10, %c0_11, %c0_12] : memref<1x8x16xf32, #tpu.memory_space<vmem>>, vector<1x8x16xf32>
    %17 = vector.shape_cast %16 : vector<1x8x16xf32> to vector<8x16xf32>
    %18 = vector.shape_cast %15 : vector<8x16xf32> to vector<1x8x16xf32>
    tpu.vector_store %arg6[%c0_10, %c0_11, %c0_12], %18 {strides = array<i32>} : memref<1x8x16xf32, #tpu.memory_space<vmem>>, vector<1x8x16xf32>,
    return
  }
  func.func @transform_0(%arg0: i32, %arg1: i32) -> (i32, i32, i32) {
    %c0_i32 = arith.constant 0 : i32
    %c0_i32_0 = arith.constant 0 : i32
    return %arg0, %c0_i32, %arg1 : i32, i32, i32
  }
  func.func @transform_1(%arg0: i32, %arg1: i32) -> (i32, i32, i32, i32) {
    %c0_i32 = arith.constant 0 : i32
    %c0_i32_0 = arith.constant 0 : i32
    %c0_i32_1 = arith.constant 0 : i32
    return %arg0, %arg1, %c0_i32, %c0_i32_0 : i32, i32, i32, i32
  }
  func.func @transform_2(%arg0: i32, %arg1: i32) -> (i32, i32) {
    %c0_i32 = arith.constant 0 : i32
    %c0_i32_0 = arith.constant 0 : i32
    %c0_i32_1 = arith.constant 0 : i32
    return %c0_i32, %c0_i32_0 : i32, i32
  }
  func.func @transform_3(%arg0: i32, %arg1: i32) -> (i32, i32) {
    %c0_i32 = arith.constant 0 : i32
    %c0_i32_0 = arith.constant 0 : i32
    %c0_i32_1 = arith.constant 0 : i32
    return %c0_i32, %c0_i32_0 : i32, i32
  }
  func.func @transform_4(%arg0: i32, %arg1: i32) -> (i32, i32, i32) {
    %c0_i32 = arith.constant 0 : i32
    %c0_i32_0 = arith.constant 0 : i32
    return %arg0, %c0_i32, %arg1 : i32, i32, i32
  }
}

</mosaic_0001>

<llo_original>
// kernel: tpu_custom_call.1
$region0: #{tpu_custom_call.1}
  #allocation0 [shape = 'u32[]', space=smem, size = 0x4, offset = 0x4, fixed_abs, tag = 'smem constant byte address 0x4 - core index']
  #allocation1 [shape = 'u32[144,128]{1,0:T(1,128)}', space=vmem, size = 0x12000, scoped, tag = 'internal scratch']
  %s0 = inlined_call_operand.vmem [shape: bf16[2,4,16], index: 0, kind: input, shape index: {}]
  %s1 = inlined_call_operand.vmem [shape: bf16[2,1,4,2], index: 1, kind: input, shape index: {}]
  %s2 = inlined_call_operand.vmem [shape: bf16[8,12], index: 2, kind: input, shape index: {}]
  %s3 = inlined_call_operand.vmem [shape: f32[8,1], index: 3, kind: input, shape index: {}]
  %s4 = inlined_call_operand.hbm [shape: f32[2,8,16], index: 4, kind: output, shape index: {}]
  %s5 = sld [smem:[#allocation0]]
  $region49: #{tpu_custom_call.1} parent=0
    _
  %s7 = ssub.s32 1, %s5
  %s8 = scalar_select 0, %s7, %s5
  $region1: #{tpu_custom_call.1} parent=0
    #allocation2 [shape = 'u8[8192]{0}', space=vmem, size = 0x2000, scoped, tag = 'output window, operand 0']
    #allocation3 [shape = 's32[2]{0}', space=sflag, size = 0x8, scoped, tag = 'scoped memory for tpu_custom_call.1']
    %9 = vsyncpa [#allocation3], 0
    %s10 = scalar_lea.sflag [#allocation3], 1
    %11 = vsyncpa %s10, 0
    loop: start=0, step=1, limit=4
    $region2: #{tpu_custom_call.1} parent=1 // loop_pre_header
      _
    $region3: #{tpu_custom_call.1} parent=1 // loop_header
      %s13 = sphi 0, %s17
      %p14 = scmp.ge.s32.totalorder %s13, 4
      %s20 = sphi 0, %s32
      %s21 = sphi 0, %s28
      %s22 = sphi 0, %s20
      %s23 = sphi 0, %s21
      %s24 = sphi 0, %s22
      %s25 = sphi 0, %s23
      %s37 = sphi 0, %s39
      %s40 = sphi 0, %s37
      %s41 = sphi 0, %s40
      %s57 = sphi 0, %s41
      %s65 = sphi 0, %s67
      %s68 = sphi 0, %s65
      %s69 = sphi 0, %s68
      %s85 = sphi 0, %s69
      %s89 = sphi 0, %s89
      %s91 = sphi 0, %s89
      %s92 = sphi 0, %s91
      %s106 = sphi 0, %s92
      %s110 = sphi 0, %s110
      %s112 = sphi 0, %s110
      %s113 = sphi 0, %s112
      %s127 = sphi 0, %s113
      %s135 = sphi 0, %s137
      %s138 = sphi 0, %s135
      %s139 = sphi 0, %s138
      %s155 = sphi 0, %s139
    $region4: #{tpu_custom_call.1} parent=1 // loop_header_branch
      %16 = sbr.rel (%p14) target = $region8
    $region5: #{tpu_custom_call.1} parent=1 // loop_body
      %s18 = ssub.s32 %s13, 1
      %s19 = ssub.s32 %s13, 2
      %s26 = sadd.s32 1, %s21
      %p27 = scmp.ge.s32.totalorder %s26, 1
      %s28 = scalar_select %p27, 0, %s26
      %s29 = sadd.s32 1, %s20
      %s30 = scalar_select %p27, %s29, %s20
      %p31 = scmp.ge.s32.totalorder %s30, 2
      %s32 = scalar_select %p31, 0, %s30
      %s33 = ssub.s32 %s20, %s32
      %s34 = ssub.s32 %s21, %s28
      %s35 = sor.u32 %s33, %s34
      %p36 = scmp.eq.s32.totalorder %s35, 0
      %s38 = sadd.s32 %s37, 1
      %s39 = scalar_select %p36, %s37, %s38
      %p42 = pneg %p36
      %p43 = scmp.eq.s32.totalorder %s13, 1
      %p44 = por %p42, %p43
      %p45 = scmp.ne.s32.totalorder %s37, %s40
      %p46 = scmp.eq.s32.totalorder %s13, 0
      %p47 = por %p45, %p46
      %p48 = scmp.ne.s32.totalorder %s37, %s40
      %p49 = scmp.eq.s32.totalorder %s18, 1
      %p50 = por %p48, %p49
      %p51 = scmp.ne.s32.totalorder %s40, %s41
      %p52 = scmp.eq.s32.totalorder %s18, 0
      %p53 = por %p51, %p52
      %p54 = scmp.ne.s32.totalorder %s40, %s41
      %p55 = scmp.eq.s32.totalorder %s19, 1
      %p56 = por %p54, %p55
      %p58 = scmp.ne.s32.totalorder %s41, %s57
      %p59 = scmp.eq.s32.totalorder %s19, 0
      %p60 = por %p58, %p59
      %s61 = ssub.s32 %s20, %s32
      %s62 = ssub.s32 %s21, %s28
      %s63 = sor.u32 %s61, %s62
      %p64 = scmp.eq.s32.totalorder %s63, 0
      %s66 = sadd.s32 %s65, 1
      %s67 = scalar_select %p64, %s65, %s66
      %p70 = pneg %p64
      %p71 = scmp.eq.s32.totalorder %s13, 1
      %p72 = por %p70, %p71
      %p73 = scmp.ne.s32.totalorder %s65, %s68
      %p74 = scmp.eq.s32.totalorder %s13, 0
      %p75 = por %p73, %p74
      %p76 = scmp.ne.s32.totalorder %s65, %s68
      %p77 = scmp.eq.s32.totalorder %s18, 1
      %p78 = por %p76, %p77
      %p79 = scmp.ne.s32.totalorder %s68, %s69
      %p80 = scmp.eq.s32.totalorder %s18, 0
      %p81 = por %p79, %p80
      %p82 = scmp.ne.s32.totalorder %s68, %s69
      %p83 = scmp.eq.s32.totalorder %s19, 1
      %p84 = por %p82, %p83
      %p86 = scmp.ne.s32.totalorder %s69, %s85
      %p87 = scmp.eq.s32.totalorder %s19, 0
      %p88 = por %p86, %p87
      %s90 = sadd.s32 %s89, 1
      %p93 = scmp.eq.s32.totalorder %s13, 1
      %p94 = scmp.ne.s32.totalorder %s89, %s91
      %p95 = scmp.eq.s32.totalorder %s13, 0
      %p96 = por %p94, %p95
      %p97 = scmp.ne.s32.totalorder %s89, %s91
      %p98 = scmp.eq.s32.totalorder %s18, 1
      %p99 = por %p97, %p98
      %p100 = scmp.ne.s32.totalorder %s91, %s92
      %p101 = scmp.eq.s32.totalorder %s18, 0
      %p102 = por %p100, %p101
      %p103 = scmp.ne.s32.totalorder %s91, %s92
      %p104 = scmp.eq.s32.totalorder %s19, 1
      %p105 = por %p103, %p104
      %p107 = scmp.ne.s32.totalorder %s92, %s106
      %p108 = scmp.eq.s32.totalorder %s19, 0
      %p109 = por %p107, %p108
      %s111 = sadd.s32 %s110, 1
      %p114 = scmp.eq.s32.totalorder %s13, 1
      %p115 = scmp.ne.s32.totalorder %s110, %s112
      %p116 = scmp.eq.s32.totalorder %s13, 0
      %p117 = por %p115, %p116
      %p118 = scmp.ne.s32.totalorder %s110, %s112
      %p119 = scmp.eq.s32.totalorder %s18, 1
      %p120 = por %p118, %p119
      %p121 = scmp.ne.s32.totalorder %s112, %s113
      %p122 = scmp.eq.s32.totalorder %s18, 0
      %p123 = por %p121, %p122
      %p124 = scmp.ne.s32.totalorder %s112, %s113
      %p125 = scmp.eq.s32.totalorder %s19, 1
      %p126 = por %p124, %p125
      %p128 = scmp.ne.s32.totalorder %s113, %s127
      %p129 = scmp.eq.s32.totalorder %s19, 0
      %p130 = por %p128, %p129
      %s131 = ssub.s32 %s20, %s32
      %s132 = ssub.s32 %s21, %s28
      %s133 = sor.u32 %s131, %s132
      %p134 = scmp.eq.s32.totalorder %s133, 0
      %s136 = sadd.s32 %s135, 1
      %s137 = scalar_select %p134, %s135, %s136
      %p140 = pneg %p134
      %p141 = scmp.eq.s32.totalorder %s13, 1
      %p142 = por %p140, %p141
      %p143 = scmp.ne.s32.totalorder %s135, %s138
      %p144 = scmp.eq.s32.totalorder %s13, 0
      %p145 = por %p143, %p144
      %p146 = scmp.ne.s32.totalorder %s135, %s138
      %p147 = scmp.eq.s32.totalorder %s18, 1
      %p148 = por %p146, %p147
      %p149 = scmp.ne.s32.totalorder %s138, %s139
      %p150 = scmp.eq.s32.totalorder %s18, 0
      %p151 = por %p149, %p150
      %p152 = scmp.ne.s32.totalorder %s138, %s139
      %p153 = scmp.eq.s32.totalorder %s19, 1
      %p154 = por %p152, %p153
      %p156 = scmp.ne.s32.totalorder %s139, %s155
      %p157 = scmp.eq.s32.totalorder %s19, 0
      %p158 = por %p156, %p157
      %p159 = scmp.le.s32.totalorder 1, %s13
      %p160 = scmp.lt.s32.totalorder %s13, 3
      %p161 = pnand %p159, %p160
      %p162 = pneg %p161
      // Predicated region
      $region9: #{tpu_custom_call.1} parent=5 // pred_check
        _
      $region10: #{tpu_custom_call.1} parent=5 // pred_check_branch
        %164 = sbr.rel (%p161) target = $region12
      $region11: #{tpu_custom_call.1} parent=5 // pred_region
        %s165 = ssub.s32 %s13, 1
        // Predicated region
        $region13: #{tpu_custom_call.1} parent=11 // pred_check
          %p166 = pneg %p102
        $region14: #{tpu_custom_call.1} parent=11 // pred_check_branch
          %168 = sbr.rel (%p166) target = $region16
        $region15: #{tpu_custom_call.1} parent=11 // pred_region
          _
        $region16: #{tpu_custom_call.1} parent=11 // pred_fallthru
          _
        // Predicated region
        $region17: #{tpu_custom_call.1} parent=11 // pred_check
          %p169 = pneg %p123
        $region18: #{tpu_custom_call.1} parent=11 // pred_check_branch
          %171 = sbr.rel (%p169) target = $region20
        $region19: #{tpu_custom_call.1} parent=11 // pred_region
          _
        $region20: #{tpu_custom_call.1} parent=11 // pred_fallthru
          _
      $region12: #{tpu_custom_call.1} parent=5 // pred_fallthru
        _
      %p172 = scmp.lt.s32.totalorder %s13, 2
      // Predicated region
      $region21: #{tpu_custom_call.1} parent=5 // pred_check
        %p173 = pneg %p172
      $region22: #{tpu_custom_call.1} parent=5 // pred_check_branch
        %175 = sbr.rel (%p173) target = $region24
      $region23: #{tpu_custom_call.1} parent=5 // pred_region
        // Predicated region
        $region25: #{tpu_custom_call.1} parent=23 // pred_check
          %p176 = pneg %p47
        $region26: #{tpu_custom_call.1} parent=23 // pred_check_branch
          %178 = sbr.rel (%p176) target = $region28
        $region27: #{tpu_custom_call.1} parent=23 // pred_region
          %p179 = scmp.lt.s32.totalorder %s20, 1
          %s180 = scalar_select %p179, %s20, 1
          %p181 = scmp.lt.s32.totalorder %s21, 0
          %s182 = scalar_select %p181, %s21, 0
          %s183 = sadd.s32 %s182, %s180
          %s184 = smul.addr %s183, 2
          %s185 = scalar_lea.vmem %s0, %s184
        $region28: #{tpu_custom_call.1} parent=23 // pred_fallthru
          _
        // Predicated region
        $region29: #{tpu_custom_call.1} parent=23 // pred_check
          %p186 = pneg %p75
        $region30: #{tpu_custom_call.1} parent=23 // pred_check_branch
          %188 = sbr.rel (%p186) target = $region32
        $region31: #{tpu_custom_call.1} parent=23 // pred_region
          %p189 = scmp.lt.s32.totalorder %s20, 1
          %s190 = scalar_select %p189, %s20, 1
          %p191 = scmp.lt.s32.totalorder %s21, 0
          %s192 = scalar_select %p191, %s21, 0
          %s193 = sadd.s32 %s192, %s190
          %s194 = smul.addr %s193, 2
          %s195 = scalar_lea.vmem %s1, %s194
        $region32: #{tpu_custom_call.1} parent=23 // pred_fallthru
          _
      $region24: #{tpu_custom_call.1} parent=5 // pred_fallthru
        _
      %p196 = scmp.le.s32.totalorder 1, %s13
      %p197 = scmp.lt.s32.totalorder %s13, 3
      %p198 = pnand %p196, %p197
      %p199 = pneg %p198
      // Predicated region
      $region33: #{tpu_custom_call.1} parent=5 // pred_check
        _
      $region34: #{tpu_custom_call.1} parent=5 // pred_check_branch
        %201 = sbr.rel (%p198) target = $region36
      $region35: #{tpu_custom_call.1} parent=5 // pred_region
        %s202 = ssub.s32 %s13, 1
        %p203 = scmp.lt.s32.totalorder %s22, 1
        %s204 = scalar_select %p203, %s22, 1
        %p205 = scmp.lt.s32.totalorder %s23, 0
        %s206 = scalar_select %p205, %s23, 0
        %s207 = sadd.s32 %s206, %s204
        %s208 = smul.addr %s207, 2
        %s209 = scalar_lea.vmem %s0, %s208
        %p210 = pneg %p53
        %p211 = pneg %p50
        %p212 = scmp.lt.s32.totalorder %s22, 1
        %s213 = scalar_select %p212, %s22, 1
        %p214 = scmp.lt.s32.totalorder %s23, 0
        %s215 = scalar_select %p214, %s23, 0
        %s216 = sadd.s32 %s215, %s213
        %s217 = smul.addr %s216, 2
        %s218 = scalar_lea.vmem %s1, %s217
        %p219 = pneg %p81
        %p220 = pneg %p78
        %p221 = pneg %p102
        %p222 = pneg %p99
        %p223 = pneg %p123
        %p224 = pneg %p120
        %p225 = pneg %p151
        %p226 = pneg %p148
        %s227 = sand.u32 %s138, 1
        %s228 = scalar_lea.sflag [#allocation3], %s227
        %s229 = sand.u32 %s138, 1
        %s230 = smul.addr %s229, 8
        %s231 = scalar_lea.vmem [#allocation2], %s230
        %p232 = scmp.lt.s32.totalorder %s22, 1
        %s233 = scalar_select %p232, %s22, 1
        %p234 = scmp.lt.s32.totalorder %s23, 0
        %s235 = scalar_select %p234, %s23, 0
        %s236 = sadd.s32 %s235, %s233
        %s237 = smul.addr %s236, 2
        %s238 = scalar_lea.vmem %s0, %s237
        %p239 = scmp.lt.s32.totalorder %s22, 1
        %s240 = scalar_select %p239, %s22, 1
        %p241 = scmp.lt.s32.totalorder %s23, 0
        %s242 = scalar_select %p241, %s23, 0
        %s243 = sadd.s32 %s242, %s240
        %s244 = smul.addr %s243, 2
        %s245 = scalar_lea.vmem %s1, %s244
        %v247 = vld [vmem:[%s238] sm:$0x3]
        %v248 = vld [vmem:[%s245] sm:$0x3]
        %v251 = vunpack.c.l.s4 1983009808
        %v252 = vunpack.c.0.s8 %v251
        %v253 = vlaneseq
        %v254 = vshrl.u32 %v253, 7
        %v255 = vsub.s32 %v252, %v254
        %v256 = vrot.slane %v247, %v255
        %257 = vrot.lane.b32.xlu0 %v256, 1
        %v258 = vpop.permute.xlu0 %257
        %v261 = vunpack.c.l.s4 1983009808
        %v262 = vunpack.c.0.s8 %v261
        %v263 = vlaneseq
        %v264 = vshrl.u32 %v263, 7
        %v265 = vsub.s32 %v262, %v264
        %v266 = vrot.slane %v248, %v265
        %267 = vrot.lane.b32.xlu0 %v266, 16
        %v268 = vpop.permute.xlu0 %267
        %vm269 = vcmask 7168
        %v272 = vsel %vm269, %v248, %v258
        %vm273 = vcmask 138240
        %v275 = vsel %vm273, %v272, %v268
        %v277 = vrot.slane %v275, 6
        %278 = vrot.lane.b32.xlu0 %v277, 127
        %v279 = vpop.permute.xlu0 %278
        %v280 = vrot.slane %v275, 4
        %281 = vrot.lane.b32.xlu0 %v280, 126
        %v282 = vpop.permute.xlu0 %281
        %vm283 = vcmask 1041408
        %v285 = vsel %vm283, %v275, %v279
        %vm286 = vcmask 1043456
        %v288 = vsel %vm286, %v285, %v282
        %v289 = vld [vmem:[%s2] sm:$0xf]
        %v290 = vld [vmem:[%s3] sm:$0xff]
        %292 = vset.pattern.permute.xlu0 0
        %293 = vperm.xlu0 %292, %v290
        %v294 = vpop.permute.xlu0 %293
        %vm296 = vcmask 97280
        %v298 = vsel %vm296, %v289, 0
        %vm300 = vcmask 1045504
        %v301 = vsel %vm300, %v288, 0
        %303 = vmatprep.subr.bf16.mxu0 0
        %304 = vmatpush1.bf16.msra.mxu0 0
        %305 = vmatprep.subr.bf16.mxu0 0
        %306 = vmatpush1.bf16.msra.mxu0 0
        %307 = vmatprep.subr.bf16.mxu0 0
        %308 = vmatpush1.bf16.msra.mxu0 0
        %309 = vmatprep.subr.bf16.mxu0 0
        %310 = vmatpush1.bf16.msra.mxu0 0
        %311 = vmatprep.subr.bf16.mxu0 0
        %312 = vmatpush1.bf16.msra.mxu0 0
        %313 = vmatprep.subr.bf16.mxu0 0
        %314 = vmatpush1.bf16.msra.mxu0 0
        %315 = vmatprep.subr.bf16.mxu0 0
        %316 = vmatpush1.bf16.msra.mxu0 0
        %317 = vmatprep.subr.bf16.mxu0 0
        %318 = vmatpush1.bf16.msra.mxu0 %v301
        %319 = vmatprep.subr.bf16.mxu0 0
        %320 = vmatpush2.bf16.msra.mxu0 0
        %321 = vmatprep.subr.bf16.mxu0 0
        %322 = vmatpush2.bf16.msra.mxu0 0
        %323 = vmatprep.subr.bf16.mxu0 0
        %324 = vmatpush2.bf16.msra.mxu0 0
        %325 = vmatprep.subr.bf16.mxu0 0
        %326 = vmatpush2.bf16.msra.mxu0 0
        %327 = vmatprep.subr.bf16.mxu0 0
        %328 = vmatpush2.bf16.msra.mxu0 0
        %329 = vmatprep.subr.bf16.mxu0 0
        %330 = vmatpush2.bf16.msra.mxu0 0
        %331 = vmatprep.subr.bf16.mxu0 0
        %332 = vmatpush2.bf16.msra.mxu0 0
        %333 = vmatprep.subr.bf16.mxu0 0
        %334 = vmatpush2.bf16.msra.mxu0 0
        %335 = vmatprep.mubr.bf16.mxu0 0
        %336 = vmatmul.mubr.bf16.gmra.mxu0 %v298
        %v337 = vpop.f32.mrf.mxu0
        %v338 = vadd.f32 %v294, %v337
        %v339 = vpop.f32.mrf.mxu0
        %v340 = vpop.f32.mrf.mxu0
        %v341 = vpop.f32.mrf.mxu0
        %342 = vdwg.mxu0
        %vm343 = vcmask 130048
        %344 = vst.msk [vmem:[%s231] sm:$0xff] %vm343, %v338
        %s345 = sand.u32 %s138, 1
        %s346 = scalar_lea.sflag [#allocation3], %s345
        %s347 = sand.u32 %s138, 1
        %s348 = smul.addr %s347, 8
        %s349 = scalar_lea.vmem [#allocation2], %s348
        // Predicated region
        $region37: #{tpu_custom_call.1} parent=35 // pred_check
          %p350 = pneg %p148
        $region38: #{tpu_custom_call.1} parent=35 // pred_check_branch
          %352 = sbr.rel (%p350) target = $region40
        $region39: #{tpu_custom_call.1} parent=35 // pred_region
          %s354 = ssub.s32 128, 128
          %355 = vsyncadd %s346, %s354
          %s356 = sadd.s32 %s23, %s22
          %s357 = smul.addr %s356, 128
          %s358 = scalar_lea.hbm %s4, %s357
          %s360 = sshll.u32 %s349, 4
          %s361 = int_to_ptr.vmem [resolvable:$true] %s360
          %363 = dma.vmem_to_hbm [thread:$0]  %s361, 128, %s358, %s346
        $region40: #{tpu_custom_call.1} parent=35 // pred_fallthru
          _
      $region36: #{tpu_custom_call.1} parent=5 // pred_fallthru
        _
      %p364 = scmp.le.s32.totalorder 2, %s13
      // Predicated region
      $region41: #{tpu_custom_call.1} parent=5 // pred_check
        %p365 = pneg %p364
      $region42: #{tpu_custom_call.1} parent=5 // pred_check_branch
        %367 = sbr.rel (%p365) target = $region44
      $region43: #{tpu_custom_call.1} parent=5 // pred_region
        %s368 = ssub.s32 %s13, 2
        // Predicated region
        $region45: #{tpu_custom_call.1} parent=43 // pred_check
          %p369 = pneg %p154
        $region46: #{tpu_custom_call.1} parent=43 // pred_check_branch
          %371 = sbr.rel (%p369) target = $region48
        $region47: #{tpu_custom_call.1} parent=43 // pred_region
          %s372 = sand.u32 %s139, 1
          %s373 = scalar_lea.sflag [#allocation3], %s372
          %s374 = sand.u32 %s139, 1
          %s375 = smul.addr %s374, 8
          %s376 = scalar_lea.vmem [#allocation2], %s375
          %377 = dma.done %s373, 128
        $region48: #{tpu_custom_call.1} parent=43 // pred_fallthru
          _
      $region44: #{tpu_custom_call.1} parent=5 // pred_fallthru
        _
    $region6: #{tpu_custom_call.1} parent=1 // loop_footer
      %s17 = sadd.s32 1, %s13
    $region7: #{tpu_custom_call.1} parent=1 // loop_footer_branch
      %12 = sbr.rel target = $region3
    $region8: #{tpu_custom_call.1} parent=1 // loop_exit
      _
    %378 = vsyncpa [#allocation3], 1
    %s379 = scalar_lea.sflag [#allocation3], 1
    %380 = vsyncpa %s379, 1

</llo_original>
